<compile_context>
chip_gen: v7x
topology: tpu7x:2x2x1
jax: 0.10.0
libtpu: 0.0.40
codegen_flags: <defaults>
</compile_context>

<pallas_src>
import jax
import jax.numpy as jnp
from jax.experimental import pallas as pl
from jax.experimental.pallas import tpu as pltpu


# ---------------------------------------------------------------------------
# Packed-parameter slab layout (all f32, width 8):
#   rows  0:4   W1   (4,8)      shared trunk Linear(4,8)   [rows 4:8 zero pad]
#   rows  8:16  W2   (8,8)      shared trunk Linear(8,8)
#   rows 16:24  WH1  (8,8)      fused head layer 1  [wv1 | wa1]
#   rows 24:32  WH2  (8,8)      fused head layer 2  block-diag(wv2, wa2)
#   row  32     b1   (8,)
#   row  33     b2   (8,)
#   row  34     bh1  (8,)       [bv1 | ba1]
#   row  35     bh2  (8,)       [bv2, ba2, 0...]
#   rows 36:40  zero pad
# ---------------------------------------------------------------------------
SLAB_ROWS = 40
SLAB_COLS = 8


def dqnet_kernel(x_ref, p_ref, out_ref):
    B = x_ref.shape[0]
    A = out_ref.shape[1]

    x = x_ref[...]                                  # (B, 4)

    # static slices of the single packed-parameter slab (free ref views)
    w1 = p_ref[0:4, :]                              # (4, 8)
    w2 = p_ref[8:16, :]                             # (8, 8)
    wh1 = p_ref[16:24, :]                           # (8, 8)
    wh2 = p_ref[24:32, :]                           # (8, 8)
    b1 = p_ref[32:33, :]                            # (1, 8)
    b2 = p_ref[33:34, :]
    bh1 = p_ref[34:35, :]
    bh2 = p_ref[35:36, :]

    # shared trunk: Linear(4,8)+ReLU, Linear(8,8)+ReLU
    h = jnp.maximum(jnp.dot(x, w1, preferred_element_type=jnp.float32) + b1, 0.0)
    h = jnp.maximum(jnp.dot(h, w2, preferred_element_type=jnp.float32) + b2, 0.0)

    # fused value/advantage heads: 2 matmuls instead of 4
    g = jnp.maximum(jnp.dot(h, wh1, preferred_element_type=jnp.float32) + bh1, 0.0)
    y = jnp.dot(g, wh2, preferred_element_type=jnp.float32) + bh2     # (B, 8)

    v = y[:, 0:1]                                   # (B, 1)
    a = y[:, 1:1 + A]                               # (B, A)

    # PyTorch `advantage.mean()` reduces over ALL elements (batch and actions).
    # Explicit sum * static reciprocal (avoids the divide after the XLU reduce).
    mean_a = jnp.sum(a, keepdims=True) * (1.0 / (B * A))   # (1, 1)

    out_ref[...] = v + (a - mean_a)


def pack_params(params):
    """Pack the 12 PyTorch-Linear tensors (stored as (in, out)) into one slab."""
    A = params["wa2"].shape[1]
    assert 1 <= A <= 7, "slab layout assumes num_actions <= 7"

    def as_row(b):
        b = jnp.ravel(b).astype(jnp.float32)
        return jnp.pad(b, (0, SLAB_COLS - b.shape[0]))[None, :]

    # fused head layer 1: [value-hidden | advantage-hidden]
    wh1 = jnp.concatenate([params["wv1"], params["wa1"]], axis=1)        # (8, 8)
    bh1 = jnp.concatenate([jnp.ravel(params["bv1"]), jnp.ravel(params["ba1"])])

    # fused head layer 2: block-diagonal (8, 1+A) padded to (8, 8)
    wh2 = jnp.zeros((8, SLAB_COLS), jnp.float32)
    wh2 = wh2.at[0:4, 0:1].set(params["wv2"])
    wh2 = wh2.at[4:8, 1:1 + A].set(params["wa2"])
    bh2 = jnp.concatenate([jnp.ravel(params["bv2"]), jnp.ravel(params["ba2"])])

    w1 = jnp.pad(params["w1"], ((0, 4), (0, 0)))                         # (8, 8)

    slab = jnp.concatenate(
        [
            w1,                                   # rows 0:8
            params["w2"],                         # rows 8:16
            wh1,                                  # rows 16:24
            wh2,                                  # rows 24:32
            as_row(params["b1"]),                 # row 32
            as_row(params["b2"]),                 # row 33
            as_row(bh1),                          # row 34
            as_row(bh2),                          # row 35
            jnp.zeros((4, SLAB_COLS), jnp.float32),  # rows 36:40
        ],
        axis=0,
    ).astype(jnp.float32)
    assert slab.shape == (SLAB_ROWS, SLAB_COLS)
    return slab


def dqnet_forward(state, packed_params, num_actions):
    """state: (B, 4) f32.  packed_params: (40, 8) f32 slab from pack_params()."""
    B = state.shape[0]
    vmem = pl.BlockSpec(memory_space=pltpu.MemorySpace.VMEM)
    return pl.pallas_call(
        dqnet_kernel,
        out_shape=jax.ShapeDtypeStruct((B, num_actions), jnp.float32),
        in_specs=[vmem, vmem],
        out_specs=vmem,
    )(state, packed_params)


def init_params(key, num_actions=2):
    """Deterministic synthetic parameters, stored transposed as (in, out)."""
    shapes = {
        "w1": (4, 8), "b1": (1, 8),
        "w2": (8, 8), "b2": (1, 8),
        "wv1": (8, 4), "bv1": (1, 4),
        "wv2": (4, 1), "bv2": (1, 1),
        "wa1": (8, 4), "ba1": (1, 4),
        "wa2": (4, num_actions), "ba2": (1, num_actions),
    }
    fan_in = {
        "w1": 4, "b1": 4, "w2": 8, "b2": 8,
        "wv1": 8, "bv1": 8, "wv2": 4, "bv2": 4,
        "wa1": 8, "ba1": 8, "wa2": 4, "ba2": 4,
    }
    params = {}
    keys = jax.random.split(key, len(shapes))
    for k, name in zip(keys, sorted(shapes)):
        scale = 1.0 / jnp.sqrt(jnp.float32(fan_in[name]))
        params[name] = scale * jax.random.normal(k, shapes[name], dtype=jnp.float32)
    return params


def dqnet_reference(state, params):
    """Pure-JAX reference (uses the UNFUSED parameters)."""
    relu = lambda z: jnp.maximum(z, 0.0)
    h = relu(state @ params["w1"] + params["b1"])
    h = relu(h @ params["w2"] + params["b2"])
    v = relu(h @ params["wv1"] + params["bv1"]) @ params["wv2"] + params["bv2"]
    a = relu(h @ params["wa1"] + params["ba1"]) @ params["wa2"] + params["ba2"]
    return v + (a - jnp.mean(a))


if __name__ == "__main__":
    key = jax.random.PRNGKey(0)
    pkey, xkey = jax.random.split(key)

    num_actions = 2
    batch = 8
    params = init_params(pkey, num_actions=num_actions)
    packed = pack_params(params)
    state = jax.random.normal(xkey, (batch, 4), dtype=jnp.float32)

    out = dqnet_forward(state, packed, num_actions)
    out = jax.block_until_ready(out)

    ref = dqnet_reference(state, params)
    assert out.shape == (batch, num_actions)
    assert jnp.allclose(out, ref, atol=1e-5, rtol=1e-5), "mismatch vs reference"

    print("KERNEL_OK")
</pallas_src>

<mosaic_0001>
module attributes {stable_mosaic.version = 11 : i64} {
  func.func @dqnet_kernel(%arg0: memref<8x4xf32, #tpu.memory_space<vmem>>, %arg1: memref<40x8xf32, #tpu.memory_space<vmem>>, %arg2: memref<8x2xf32, #tpu.memory_space<vmem>>) attributes {dimension_semantics = [], scalar_prefetch = 0 : i64, scratch_operands = 0 : i64, tpu.core_type = #tpu.core_type<tc>} {
    %c0 = arith.constant 0 : index
    %c0_0 = arith.constant 0 : index
    %0 = vector.load %arg0[%c0, %c0_0] : memref<8x4xf32, #tpu.memory_space<vmem>>, vector<8x4xf32>
    %c0_1 = arith.constant 0 : index
    %c0_2 = arith.constant 0 : index
    %1 = vector.load %arg1[%c0_1, %c0_2] : memref<40x8xf32, #tpu.memory_space<vmem>>, vector<4x8xf32>
    %c8 = arith.constant 8 : index
    %c0_3 = arith.constant 0 : index
    %2 = vector.load %arg1[%c8, %c0_3] : memref<40x8xf32, #tpu.memory_space<vmem>>, vector<8x8xf32>
    %c16 = arith.constant 16 : index
    %c0_4 = arith.constant 0 : index
    %3 = vector.load %arg1[%c16, %c0_4] : memref<40x8xf32, #tpu.memory_space<vmem>>, vector<8x8xf32>
    %c24 = arith.constant 24 : index
    %c0_5 = arith.constant 0 : index
    %4 = vector.load %arg1[%c24, %c0_5] : memref<40x8xf32, #tpu.memory_space<vmem>>, vector<8x8xf32>
    %c32 = arith.constant 32 : index
    %c0_6 = arith.constant 0 : index
    %5 = vector.load %arg1[%c32, %c0_6] : memref<40x8xf32, #tpu.memory_space<vmem>>, vector<1x8xf32>
    %c33 = arith.constant 33 : index
    %c0_7 = arith.constant 0 : index
    %6 = vector.load %arg1[%c33, %c0_7] : memref<40x8xf32, #tpu.memory_space<vmem>>, vector<1x8xf32>
    %c34 = arith.constant 34 : index
    %c0_8 = arith.constant 0 : index
    %7 = vector.load %arg1[%c34, %c0_8] : memref<40x8xf32, #tpu.memory_space<vmem>>, vector<1x8xf32>
    %c35 = arith.constant 35 : index
    %c0_9 = arith.constant 0 : index
    %8 = vector.load %arg1[%c35, %c0_9] : memref<40x8xf32, #tpu.memory_space<vmem>>, vector<1x8xf32>
    %cst = arith.constant dense<0.000000e+00> : vector<8x8xf32>
    %9 = tpu.matmul %0, %1, %cst {dimension_numbers = #tpu.dot_dimension_numbers<[1], [0], [0], [1], [0, 0, 1, 1], [], []>} : vector<8x4xf32>, vector<4x8xf32>, vector<8x8xf32> -> vector<8x8xf32>
    %10 = vector.broadcast %5 : vector<1x8xf32> to vector<8x8xf32>
    %11 = arith.addf %9, %10 : vector<8x8xf32>
    %cst_10 = arith.constant 0.000000e+00 : f32
    %12 = vector.broadcast %cst_10 : f32 to vector<8x8xf32>
    %13 = arith.maximumf %11, %12 : vector<8x8xf32>
    %cst_11 = arith.constant dense<0.000000e+00> : vector<8x8xf32>
    %14 = tpu.matmul %13, %2, %cst_11 {dimension_numbers = #tpu.dot_dimension_numbers<[1], [0], [0], [1], [0, 0, 1, 1], [], []>} : vector<8x8xf32>, vector<8x8xf32>, vector<8x8xf32> -> vector<8x8xf32>
    %15 = vector.broadcast %6 : vector<1x8xf32> to vector<8x8xf32>
    %16 = arith.addf %14, %15 : vector<8x8xf32>
    %cst_12 = arith.constant 0.000000e+00 : f32
    %17 = vector.broadcast %cst_12 : f32 to vector<8x8xf32>
    %18 = arith.maximumf %16, %17 : vector<8x8xf32>
    %cst_13 = arith.constant dense<0.000000e+00> : vector<8x8xf32>
    %19 = tpu.matmul %18, %3, %cst_13 {dimension_numbers = #tpu.dot_dimension_numbers<[1], [0], [0], [1], [0, 0, 1, 1], [], []>} : vector<8x8xf32>, vector<8x8xf32>, vector<8x8xf32> -> vector<8x8xf32>
    %20 = vector.broadcast %7 : vector<1x8xf32> to vector<8x8xf32>
    %21 = arith.addf %19, %20 : vector<8x8xf32>
    %cst_14 = arith.constant 0.000000e+00 : f32
    %22 = vector.broadcast %cst_14 : f32 to vector<8x8xf32>
    %23 = arith.maximumf %21, %22 : vector<8x8xf32>
    %cst_15 = arith.constant dense<0.000000e+00> : vector<8x8xf32>
    %24 = tpu.matmul %23, %4, %cst_15 {dimension_numbers = #tpu.dot_dimension_numbers<[1], [0], [0], [1], [0, 0, 1, 1], [], []>} : vector<8x8xf32>, vector<8x8xf32>, vector<8x8xf32> -> vector<8x8xf32>
    %25 = vector.broadcast %8 : vector<1x8xf32> to vector<8x8xf32>
    %26 = arith.addf %24, %25 : vector<8x8xf32>
    %27 = vector.extract_strided_slice %26 {offsets = [0, 0], sizes = [8, 1], strides = [1, 1]} : vector<8x8xf32> to vector<8x1xf32>
    %28 = vector.extract_strided_slice %26 {offsets = [0, 1], sizes = [8, 2], strides = [1, 1]} : vector<8x8xf32> to vector<8x2xf32>
    %29 = vector.shape_cast %28 : vector<8x2xf32> to vector<1x8x2xf32>
    %cst_16 = arith.constant dense<0.000000e+00> : vector<1xf32>
    %30 = vector.multi_reduction <add>, %29, %cst_16 [1, 2] : vector<1x8x2xf32> to vector<1xf32>
    %31 = vector.shape_cast %30 : vector<1xf32> to vector<1x1x1xf32>
    %32 = vector.extract %31[0, 0, 0] : f32 from vector<1x1x1xf32>
    %33 = vector.broadcast %32 : f32 to vector<1x1xf32>
    %cst_17 = arith.constant 6.250000e-02 : f32
    %34 = vector.broadcast %cst_17 : f32 to vector<1x1xf32>
    %35 = arith.mulf %33, %34 : vector<1x1xf32>
    %36 = vector.broadcast %35 : vector<1x1xf32> to vector<8x2xf32>
    %37 = arith.subf %28, %36 : vector<8x2xf32>
    %38 = vector.broadcast %27 : vector<8x1xf32> to vector<8x2xf32>
    %39 = arith.addf %38, %37 : vector<8x2xf32>
    %c0_18 = arith.constant 0 : index
    %c0_19 = arith.constant 0 : index
    %40 = vector.load %arg2[%c0_18, %c0_19] : memref<8x2xf32, #tpu.memory_space<vmem>>, vector<8x2xf32>
    tpu.vector_store %arg2[%c0_18, %c0_19], %39 {strides = array<i32>} : memref<8x2xf32, #tpu.memory_space<vmem>>, vector<8x2xf32>,
    return
  }
}

</mosaic_0001>

<llo_original>
// kernel: tpu_custom_call.1
$region0: #{tpu_custom_call.1}
  #allocation0 [shape = 'u32[]', space=smem, size = 0x4, offset = 0x4, fixed_abs, tag = 'smem constant byte address 0x4 - core index']
  #allocation1 [shape = 'u32[144,128]{1,0:T(1,128)}', space=vmem, size = 0x12000, scoped, tag = 'internal scratch']
  %s0 = inlined_call_operand.vmem [shape: f32[8,4], index: 0, kind: input, shape index: {}]
  %s1 = inlined_call_operand.vmem [shape: f32[40,8], index: 1, kind: input, shape index: {}]
  %s2 = inlined_call_operand.vmem [shape: f32[8,2], index: 2, kind: output, shape index: {}]
  %s3 = sld [smem:[#allocation0]]
  $region18: #{tpu_custom_call.1} parent=0
    _
  %s5 = ssub.s32 1, %s3
  %s6 = scalar_select 0, %s5, %s3
  // Predicated region
  $region2: #{tpu_custom_call.1} parent=0 // pred_check
    _
  $region3: #{tpu_custom_call.1} parent=0 // pred_check_branch
    %8 = sbr.rel (0) target = $region5
  $region4: #{tpu_custom_call.1} parent=0 // pred_region
    _
  $region5: #{tpu_custom_call.1} parent=0 // pred_fallthru
    _
  // Predicated region
  $region6: #{tpu_custom_call.1} parent=0 // pred_check
    _
  $region7: #{tpu_custom_call.1} parent=0 // pred_check_branch
    %10 = sbr.rel (0) target = $region9
  $region8: #{tpu_custom_call.1} parent=0 // pred_region
    _
  $region9: #{tpu_custom_call.1} parent=0 // pred_fallthru
    _
  %v11 = vld [vmem:[%s0] sm:$0xff]
  %v12 = vld [vmem:[%s1] sm:$0xf]
  %v13 = vld [vmem:[%s1 + $0x8] sm:$0xff]
  %v14 = vld [vmem:[%s1 + $0x10] sm:$0xff]
  %v15 = vld [vmem:[%s1 + $0x18] sm:$0xff]
  %v16 = vld [vmem:[%s1 + $0x20] sm:$0x1]
  %v17 = vld [vmem:[%s1 + $0x21] sm:$0x1]
  %v18 = vld [vmem:[%s1 + $0x22] sm:$0x1]
  %v19 = vld [vmem:[%s1 + $0x23] sm:$0x1]
  %v20 = vlaneseq
  %v21 = vshrl.u32 %v20, 7
  %v22 = vsub.s32 0, %v21
  %v23 = vrot.slane %v16, %v22
  %vm24 = vcmask 31744
  %v26 = vsel %vm24, %v11, 0
  %vm28 = vcmask 1043456
  %v30 = vsel %vm28, %v12, 0
  %32 = vmatprep.subr.mxu0 0.0
  %33 = vmatpush1.msra.mxu0 %v30
  %34 = vmatprep.subr.mxu0 0.0
  %35 = vmatpush1.msra.mxu0 0.0
  %36 = vmatprep.subr.mxu0 0.0
  %37 = vmatpush1.msra.mxu0 0.0
  %38 = vmatprep.subr.mxu0 0.0
  %39 = vmatpush1.msra.mxu0 0.0
  %40 = vmatprep.subr.mxu0 0.0
  %41 = vmatpush1.msra.mxu0 0.0
  %42 = vmatprep.subr.mxu0 0.0
  %43 = vmatpush1.msra.mxu0 0.0
  %44 = vmatprep.subr.mxu0 0.0
  %45 = vmatpush1.msra.mxu0 0.0
  %46 = vmatprep.subr.mxu0 0.0
  %47 = vmatpush1.msra.mxu0 0.0
  %48 = vmatprep.subr.mxu0 0.0
  %49 = vmatpush1.msra.mxu0 0.0
  %50 = vmatprep.subr.mxu0 0.0
  %51 = vmatpush1.msra.mxu0 0.0
  %52 = vmatprep.subr.mxu0 0.0
  %53 = vmatpush1.msra.mxu0 0.0
  %54 = vmatprep.subr.mxu0 0.0
  %55 = vmatpush1.msra.mxu0 0.0
  %56 = vmatprep.subr.mxu0 0.0
  %57 = vmatpush1.msra.mxu0 0.0
  %58 = vmatprep.subr.mxu0 0.0
  %59 = vmatpush1.msra.mxu0 0.0
  %60 = vmatprep.subr.mxu0 0.0
  %61 = vmatpush1.msra.mxu0 0.0
  %62 = vmatprep.subr.mxu0 0.0
  %63 = vmatpush1.msra.mxu0 0.0
  %64 = vmatprep.subr.mxu0 0.0
  %65 = vmatpush1.msra.mxu0 0.0
  %66 = vmatprep.subr.mxu0 0.0
  %67 = vmatpush1.msra.mxu0 0.0
  %68 = vmatprep.subr.mxu0 0.0
  %69 = vmatpush1.msra.mxu0 0.0
  %70 = vmatprep.subr.mxu0 0.0
  %71 = vmatpush1.msra.mxu0 0.0
  %72 = vmatprep.subr.mxu0 0.0
  %73 = vmatpush1.msra.mxu0 0.0
  %74 = vmatprep.subr.mxu0 0.0
  %75 = vmatpush1.msra.mxu0 0.0
  %76 = vmatprep.subr.mxu0 0.0
  %77 = vmatpush1.msra.mxu0 0.0
  %78 = vmatprep.subr.mxu0 0.0
  %79 = vmatpush1.msra.mxu0 0.0
  %80 = vmatprep.subr.mxu0 0.0
  %81 = vmatpush1.msra.mxu0 0.0
  %82 = vmatprep.subr.mxu0 0.0
  %83 = vmatpush1.msra.mxu0 0.0
  %84 = vmatprep.subr.mxu0 0.0
  %85 = vmatpush1.msra.mxu0 0.0
  %86 = vmatprep.subr.mxu0 0.0
  %87 = vmatpush1.msra.mxu0 0.0
  %88 = vmatprep.subr.mxu0 0.0
  %89 = vmatpush1.msra.mxu0 0.0
  %90 = vmatprep.subr.mxu0 0.0
  %91 = vmatpush1.msra.mxu0 0.0
  %92 = vmatprep.subr.mxu0 0.0
  %93 = vmatpush1.msra.mxu0 0.0
  %94 = vmatprep.subr.mxu0 0.0
  %95 = vmatpush1.msra.mxu0 0.0
  %96 = vmatprep.mubr.f32.mxu0 0.0
  %97 = vmatmul.mubr.f32.gmra.mrb[0].mxu0 %v26
  %v98 = vpop.f32.mrb[0].mxu0
  %v99 = vadd.f32 %v23, %v98
  %v100 = vpop.f32.mrb[0].mxu0
  %101 = vdwg.mxu0
  %v102 = vmax.f32 %v99, 0.0
  %v103 = vlaneseq
  %v104 = vshrl.u32 %v103, 7
  %v105 = vsub.s32 0, %v104
  %v106 = vrot.slane %v17, %v105
  %vm107 = vcmask 64512
  %v109 = vsel %vm107, %v102, 0
  %111 = vmatprep.subr.mxu0 0.0
  %112 = vmatpush1.msra.mxu0 %v13
  %113 = vmatprep.subr.mxu0 0.0
  %114 = vmatpush1.msra.mxu0 0.0
  %115 = vmatprep.subr.mxu0 0.0
  %116 = vmatpush1.msra.mxu0 0.0
  %117 = vmatprep.subr.mxu0 0.0
  %118 = vmatpush1.msra.mxu0 0.0
  %119 = vmatprep.subr.mxu0 0.0
  %120 = vmatpush1.msra.mxu0 0.0
  %121 = vmatprep.subr.mxu0 0.0
  %122 = vmatpush1.msra.mxu0 0.0
  %123 = vmatprep.subr.mxu0 0.0
  %124 = vmatpush1.msra.mxu0 0.0
  %125 = vmatprep.subr.mxu0 0.0
  %126 = vmatpush1.msra.mxu0 0.0
  %127 = vmatprep.subr.mxu0 0.0
  %128 = vmatpush1.msra.mxu0 0.0
  %129 = vmatprep.subr.mxu0 0.0
  %130 = vmatpush1.msra.mxu0 0.0
  %131 = vmatprep.subr.mxu0 0.0
  %132 = vmatpush1.msra.mxu0 0.0
  %133 = vmatprep.subr.mxu0 0.0
  %134 = vmatpush1.msra.mxu0 0.0
  %135 = vmatprep.subr.mxu0 0.0
  %136 = vmatpush1.msra.mxu0 0.0
  %137 = vmatprep.subr.mxu0 0.0
  %138 = vmatpush1.msra.mxu0 0.0
  %139 = vmatprep.subr.mxu0 0.0
  %140 = vmatpush1.msra.mxu0 0.0
  %141 = vmatprep.subr.mxu0 0.0
  %142 = vmatpush1.msra.mxu0 0.0
  %143 = vmatprep.subr.mxu0 0.0
  %144 = vmatpush1.msra.mxu0 0.0
  %145 = vmatprep.subr.mxu0 0.0
  %146 = vmatpush1.msra.mxu0 0.0
  %147 = vmatprep.subr.mxu0 0.0
  %148 = vmatpush1.msra.mxu0 0.0
  %149 = vmatprep.subr.mxu0 0.0
  %150 = vmatpush1.msra.mxu0 0.0
  %151 = vmatprep.subr.mxu0 0.0
  %152 = vmatpush1.msra.mxu0 0.0
  %153 = vmatprep.subr.mxu0 0.0
  %154 = vmatpush1.msra.mxu0 0.0
  %155 = vmatprep.subr.mxu0 0.0
  %156 = vmatpush1.msra.mxu0 0.0
  %157 = vmatprep.subr.mxu0 0.0
  %158 = vmatpush1.msra.mxu0 0.0
  %159 = vmatprep.subr.mxu0 0.0
  %160 = vmatpush1.msra.mxu0 0.0
  %161 = vmatprep.subr.mxu0 0.0
  %162 = vmatpush1.msra.mxu0 0.0
  %163 = vmatprep.subr.mxu0 0.0
  %164 = vmatpush1.msra.mxu0 0.0
  %165 = vmatprep.subr.mxu0 0.0
  %166 = vmatpush1.msra.mxu0 0.0
  %167 = vmatprep.subr.mxu0 0.0
  %168 = vmatpush1.msra.mxu0 0.0
  %169 = vmatprep.subr.mxu0 0.0
  %170 = vmatpush1.msra.mxu0 0.0
  %171 = vmatprep.subr.mxu0 0.0
  %172 = vmatpush1.msra.mxu0 0.0
  %173 = vmatprep.subr.mxu0 0.0
  %174 = vmatpush1.msra.mxu0 0.0
  %175 = vmatprep.mubr.f32.mxu0 0.0
  %176 = vmatmul.mubr.f32.gmra.mrb[0].mxu0 %v109
  %v177 = vpop.f32.mrb[0].mxu0
  %v178 = vadd.f32 %v106, %v177
  %v179 = vpop.f32.mrb[0].mxu0
  %180 = vdwg.mxu0
  %v181 = vmax.f32 %v178, 0.0
  %v182 = vlaneseq
  %v183 = vshrl.u32 %v182, 7
  %v184 = vsub.s32 0, %v183
  %v185 = vrot.slane %v18, %v184
  %v187 = vsel %vm107, %v181, 0
  %189 = vmatprep.subr.mxu0 0.0
  %190 = vmatpush1.msra.mxu0 %v14
  %191 = vmatprep.subr.mxu0 0.0
  %192 = vmatpush1.msra.mxu0 0.0
  %193 = vmatprep.subr.mxu0 0.0
  %194 = vmatpush1.msra.mxu0 0.0
  %195 = vmatprep.subr.mxu0 0.0
  %196 = vmatpush1.msra.mxu0 0.0
  %197 = vmatprep.subr.mxu0 0.0
  %198 = vmatpush1.msra.mxu0 0.0
  %199 = vmatprep.subr.mxu0 0.0
  %200 = vmatpush1.msra.mxu0 0.0
  %201 = vmatprep.subr.mxu0 0.0
  %202 = vmatpush1.msra.mxu0 0.0
  %203 = vmatprep.subr.mxu0 0.0
  %204 = vmatpush1.msra.mxu0 0.0
  %205 = vmatprep.subr.mxu0 0.0
  %206 = vmatpush1.msra.mxu0 0.0
  %207 = vmatprep.subr.mxu0 0.0
  %208 = vmatpush1.msra.mxu0 0.0
  %209 = vmatprep.subr.mxu0 0.0
  %210 = vmatpush1.msra.mxu0 0.0
  %211 = vmatprep.subr.mxu0 0.0
  %212 = vmatpush1.msra.mxu0 0.0
  %213 = vmatprep.subr.mxu0 0.0
  %214 = vmatpush1.msra.mxu0 0.0
  %215 = vmatprep.subr.mxu0 0.0
  %216 = vmatpush1.msra.mxu0 0.0
  %217 = vmatprep.subr.mxu0 0.0
  %218 = vmatpush1.msra.mxu0 0.0
  %219 = vmatprep.subr.mxu0 0.0
  %220 = vmatpush1.msra.mxu0 0.0
  %221 = vmatprep.subr.mxu0 0.0
  %222 = vmatpush1.msra.mxu0 0.0
  %223 = vmatprep.subr.mxu0 0.0
  %224 = vmatpush1.msra.mxu0 0.0
  %225 = vmatprep.subr.mxu0 0.0
  %226 = vmatpush1.msra.mxu0 0.0
  %227 = vmatprep.subr.mxu0 0.0
  %228 = vmatpush1.msra.mxu0 0.0
  %229 = vmatprep.subr.mxu0 0.0
  %230 = vmatpush1.msra.mxu0 0.0
  %231 = vmatprep.subr.mxu0 0.0
  %232 = vmatpush1.msra.mxu0 0.0
  %233 = vmatprep.subr.mxu0 0.0
  %234 = vmatpush1.msra.mxu0 0.0
  %235 = vmatprep.subr.mxu0 0.0
  %236 = vmatpush1.msra.mxu0 0.0
  %237 = vmatprep.subr.mxu0 0.0
  %238 = vmatpush1.msra.mxu0 0.0
  %239 = vmatprep.subr.mxu0 0.0
  %240 = vmatpush1.msra.mxu0 0.0
  %241 = vmatprep.subr.mxu0 0.0
  %242 = vmatpush1.msra.mxu0 0.0
  %243 = vmatprep.subr.mxu0 0.0
  %244 = vmatpush1.msra.mxu0 0.0
  %245 = vmatprep.subr.mxu0 0.0
  %246 = vmatpush1.msra.mxu0 0.0
  %247 = vmatprep.subr.mxu0 0.0
  %248 = vmatpush1.msra.mxu0 0.0
  %249 = vmatprep.subr.mxu0 0.0
  %250 = vmatpush1.msra.mxu0 0.0
  %251 = vmatprep.subr.mxu0 0.0
  %252 = vmatpush1.msra.mxu0 0.0
  %253 = vmatprep.mubr.f32.mxu0 0.0
  %254 = vmatmul.mubr.f32.gmra.mrb[0].mxu0 %v187
  %v255 = vpop.f32.mrb[0].mxu0
  %v256 = vadd.f32 %v185, %v255
  %v257 = vpop.f32.mrb[0].mxu0
  %258 = vdwg.mxu0
  %v259 = vmax.f32 %v256, 0.0
  %v260 = vlaneseq
  %v261 = vshrl.u32 %v260, 7
  %v262 = vsub.s32 0, %v261
  %v263 = vrot.slane %v19, %v262
  %v265 = vsel %vm107, %v259, 0
  %267 = vmatprep.subr.mxu0 0.0
  %268 = vmatpush1.msra.mxu0 %v15
  %269 = vmatprep.subr.mxu0 0.0
  %270 = vmatpush1.msra.mxu0 0.0
  %271 = vmatprep.subr.mxu0 0.0
  %272 = vmatpush1.msra.mxu0 0.0
  %273 = vmatprep.subr.mxu0 0.0
  %274 = vmatpush1.msra.mxu0 0.0
  %275 = vmatprep.subr.mxu0 0.0
  %276 = vmatpush1.msra.mxu0 0.0
  %277 = vmatprep.subr.mxu0 0.0
  %278 = vmatpush1.msra.mxu0 0.0
  %279 = vmatprep.subr.mxu0 0.0
  %280 = vmatpush1.msra.mxu0 0.0
  %281 = vmatprep.subr.mxu0 0.0
  %282 = vmatpush1.msra.mxu0 0.0
  %283 = vmatprep.subr.mxu0 0.0
  %284 = vmatpush1.msra.mxu0 0.0
  %285 = vmatprep.subr.mxu0 0.0
  %286 = vmatpush1.msra.mxu0 0.0
  %287 = vmatprep.subr.mxu0 0.0
  %288 = vmatpush1.msra.mxu0 0.0
  %289 = vmatprep.subr.mxu0 0.0
  %290 = vmatpush1.msra.mxu0 0.0
  %291 = vmatprep.subr.mxu0 0.0
  %292 = vmatpush1.msra.mxu0 0.0
  %293 = vmatprep.subr.mxu0 0.0
  %294 = vmatpush1.msra.mxu0 0.0
  %295 = vmatprep.subr.mxu0 0.0
  %296 = vmatpush1.msra.mxu0 0.0
  %297 = vmatprep.subr.mxu0 0.0
  %298 = vmatpush1.msra.mxu0 0.0
  %299 = vmatprep.subr.mxu0 0.0
  %300 = vmatpush1.msra.mxu0 0.0
  %301 = vmatprep.subr.mxu0 0.0
  %302 = vmatpush1.msra.mxu0 0.0
  %303 = vmatprep.subr.mxu0 0.0
  %304 = vmatpush1.msra.mxu0 0.0
  %305 = vmatprep.subr.mxu0 0.0
  %306 = vmatpush1.msra.mxu0 0.0
  %307 = vmatprep.subr.mxu0 0.0
  %308 = vmatpush1.msra.mxu0 0.0
  %309 = vmatprep.subr.mxu0 0.0
  %310 = vmatpush1.msra.mxu0 0.0
  %311 = vmatprep.subr.mxu0 0.0
  %312 = vmatpush1.msra.mxu0 0.0
  %313 = vmatprep.subr.mxu0 0.0
  %314 = vmatpush1.msra.mxu0 0.0
  %315 = vmatprep.subr.mxu0 0.0
  %316 = vmatpush1.msra.mxu0 0.0
  %317 = vmatprep.subr.mxu0 0.0
  %318 = vmatpush1.msra.mxu0 0.0
  %319 = vmatprep.subr.mxu0 0.0
  %320 = vmatpush1.msra.mxu0 0.0
  %321 = vmatprep.subr.mxu0 0.0
  %322 = vmatpush1.msra.mxu0 0.0
  %323 = vmatprep.subr.mxu0 0.0
  %324 = vmatpush1.msra.mxu0 0.0
  %325 = vmatprep.subr.mxu0 0.0
  %326 = vmatpush1.msra.mxu0 0.0
  %327 = vmatprep.subr.mxu0 0.0
  %328 = vmatpush1.msra.mxu0 0.0
  %329 = vmatprep.subr.mxu0 0.0
  %330 = vmatpush1.msra.mxu0 0.0
  %331 = vmatprep.mubr.f32.mxu0 0.0
  %332 = vmatmul.mubr.f32.gmra.mrb[0].mxu0 %v265
  %v333 = vpop.f32.mrb[0].mxu0
  %v334 = vadd.f32 %v263, %v333
  %v335 = vpop.f32.mrb[0].mxu0
  %336 = vdwg.mxu0
  %338 = vrot.lane.b32.xlu0 %v334, 127
  %v339 = vpop.permute.xlu0 %338
  %vm341 = vcmask 15360
  %v342 = vsel %vm341, %v339, 0.0
  %343 = vadd.xlane.f32.xlu0 %v342
  %v344 = vpop.xlane.xlu0 %343
  %v345 = vrot.slane %v344, 4
  %v346 = vadd.f32 %v344, %v345
  %v347 = vrot.slane %v346, 2
  %v348 = vadd.f32 %v346, %v347
  %v349 = vrot.slane %v348, 1
  %v350 = vadd.f32 %v348, %v349
  %s351 = vtos %v350
  %v352 = vstv %s351
  %v353 = vmul.f32 %v352, 0.0625
  %v354 = vsub.f32 %v334, %v353
  %355 = vset.pattern.permute.xlu0 0
  %356 = vperm.xlu0 %355, %v334
  %v357 = vpop.permute.xlu0 %356
  %v359 = vadd.f32 %v357, %v354
  %361 = vrot.lane.b32.xlu0 %v359, 127
  %v362 = vpop.permute.xlu0 %361
  %364 = vst.msk [vmem:[%s2] sm:$0xff] %vm341, %v362
  // Predicated region
  $region10: #{tpu_custom_call.1} parent=0 // pred_check
    _
  $region11: #{tpu_custom_call.1} parent=0 // pred_check_branch
    %366 = sbr.rel (0) target = $region13
  $region12: #{tpu_custom_call.1} parent=0 // pred_region
    _
  $region13: #{tpu_custom_call.1} parent=0 // pred_fallthru
    _
  // Predicated region
  $region14: #{tpu_custom_call.1} parent=0 // pred_check
    _
  $region15: #{tpu_custom_call.1} parent=0 // pred_check_branch
    %368 = sbr.rel (0) target = $region17
  $region16: #{tpu_custom_call.1} parent=0 // pred_region
    _
  $region17: #{tpu_custom_call.1} parent=0 // pred_fallthru
    _

</llo_original>
